<compile_context>
chip_gen: v7x
topology: tpu7x:2x2x1
jax: 0.10.0
libtpu: 0.0.40
codegen_flags: <defaults>
</compile_context>

<pallas_src>
import functools
import math

import jax
import jax.numpy as jnp
from jax.experimental import pallas as pl
from jax.experimental.pallas import tpu as pltpu

SCALE = 64.0
MARGIN = 0.5
COS_M = math.cos(MARGIN)
SIN_M = math.sin(MARGIN)
THETA = math.cos(math.pi - MARGIN)
SINMM = math.sin(math.pi - MARGIN) * MARGIN


def _arcface_kernel(labels_ref, logits_ref, out_ref, *, tc: int):
    x = logits_ref[...]                       # (tb, tc) f32
    lab = labels_ref[...]                     # (tb, 1)  i32

    # Target mask: relative column index of this tile's target per row.
    # lab == -1 (ignore) or a label outside this class tile gives rel < 0 or
    # rel >= tc, which never matches the non-negative (1, tc) lane iota.
    rel = lab - pl.program_id(1) * tc                               # (tb, 1)
    lane = jax.lax.broadcasted_iota(jnp.int32, (1, tc), dimension=1)
    is_target = lane == rel                                         # (tb, tc)

    # Per-row target logit via masked row reduction (XLU); the heavy margin
    # math then runs on a (tb, 1) vector only, not the full tile.
    t = jnp.sum(jnp.where(is_target, x, 0.0), axis=-1, keepdims=True)  # (tb,1)
    sin_theta = jnp.sqrt(jnp.maximum(1.0 - t * t, 0.0))
    cos_theta_m = t * COS_M - sin_theta * SIN_M
    adjusted = jnp.where(t > THETA, cos_theta_m, t - SINMM)            # (tb,1)

    # Rows whose target is not in this tile (or label == -1) have an all-false
    # mask, so the (possibly meaningless) `adjusted` value is never selected.
    out_ref[...] = jnp.where(is_target, adjusted, x) * SCALE


def _pick_tiles(B: int, C: int, tb: int, tc: int) -> tuple[int, int]:
    # Full-extent blocks are always legal; otherwise defaults stay
    # (8, 128)-aligned.
    tb = B if B <= tb else tb
    tc = C if C <= tc else tc
    # v7x megacore: if the whole problem fits in one block, split the class
    # axis so both TensorCores get a tile (no effect on single-TC v5e/v6e).
    if pl.cdiv(B, tb) == 1 and pl.cdiv(C, tc) == 1 and C >= 256:
        tc = max(128, ((pl.cdiv(C, 2) + 127) // 128) * 128)
    return tb, tc


def arcface(logits: jax.Array, labels: jax.Array, *, tb: int = 512,
            tc: int = 4096) -> jax.Array:
    """logits: (B, C) float32, labels: (B,) int32 (may contain -1)."""
    B, C = logits.shape
    labels2d = labels.reshape(B, 1).astype(jnp.int32)

    tb, tc = _pick_tiles(B, C, tb, tc)
    grid = (pl.cdiv(B, tb), pl.cdiv(C, tc))

    kernel = functools.partial(_arcface_kernel, tc=tc)

    return pl.pallas_call(
        kernel,
        out_shape=jax.ShapeDtypeStruct((B, C), logits.dtype),
        grid_spec=pltpu.PrefetchScalarGridSpec(
            num_scalar_prefetch=0,
            grid=grid,
            in_specs=[
                # Labels: block index constant across the class axis j, so the
                # same tile is reused (no re-DMA per class tile).
                pl.BlockSpec((tb, 1), lambda i, j: (i, 0)),
                # Logits: lane-dense (tb, tc) tiles.
                pl.BlockSpec((tb, tc), lambda i, j: (i, j)),
            ],
            out_specs=pl.BlockSpec((tb, tc), lambda i, j: (i, j)),
        ),
        # In-place update of logits (input 1 aliases output 0). Donate the
        # logits buffer at the call site to make this a true in-place update.
        input_output_aliases={1: 0},
        compiler_params=pltpu.CompilerParams(
            dimension_semantics=("parallel", "parallel"),
            vmem_limit_bytes=48 * 1024 * 1024,
        ),
    )(labels2d, logits)


def arcface_ref(logits, labels):
    # Pure-JAX reference mirroring the PyTorch forward.
    B, C = logits.shape
    lab = labels.reshape(B, 1)
    t = jnp.take_along_axis(logits, lab.clip(0), axis=1)      # (B, 1)
    sin = jnp.sqrt(1.0 - t * t)
    ctm = t * COS_M - sin * SIN_M
    tt = jnp.where(t > THETA, ctm, t - SINMM)
    onehot = (jnp.arange(C)[None, :] == lab) & (lab != -1)
    return jnp.where(onehot, tt, logits) * SCALE


if __name__ == "__main__":
    root = jax.random.PRNGKey(0)

    def run_case(B, C, tb, tc, case_key):
        k1, k2 = jax.random.split(case_key)
        # Cosine-similarity-like logits in (-1, 1).
        logits = jnp.tanh(jax.random.normal(k1, (B, C), dtype=jnp.float32))
        labels = jax.random.randint(k2, (B,), 0, C, dtype=jnp.int32)
        # Mark a couple of rows as "ignore" (-1), as the module supports.
        labels = labels.at[1].set(-1).at[B - 2].set(-1)

        ref = arcface_ref(logits, labels)          # reference first (aliasing)
        out = arcface(logits, labels, tb=tb, tc=tc)
        out = jax.block_until_ready(out)
        assert jnp.allclose(out, ref, atol=1e-5, rtol=1e-5), (
            f"mismatch vs reference at B={B}, C={C}, tb={tb}, tc={tc}")

    # Small case: tiles clamp to the array, then the class axis is split in
    # two (megacore path), exercising the (1, 2) grid and label-tile reuse.
    run_case(16, 512, 512, 4096, jax.random.fold_in(root, 0))
    # Multi-block 2-D grid case: exercises class-axis tiling, the relative
    # column indexing, the masked row-reduction, and ignore labels.
    run_case(32, 1024, 8, 256, jax.random.fold_in(root, 1))
    # Non-power-of-two batch with default tiles (full-extent row block).
    run_case(24, 768, 512, 4096, jax.random.fold_in(root, 2))

    print("KERNEL_OK")
</pallas_src>

<mosaic_0001>
module attributes {stable_mosaic.version = 11 : i64} {
  func.func @_arcface_kernel(%arg0: i32, %arg1: i32, %arg2: memref<16x1xi32, #tpu.memory_space<vmem>>, %arg3: memref<16x256xf32, #tpu.memory_space<vmem>>, %arg4: memref<16x256xf32, #tpu.memory_space<vmem>>) attributes {dimension_semantics = [#tpu.dimension_semantics<parallel>, #tpu.dimension_semantics<parallel>], iteration_bounds = array<i64: 1, 2>, scalar_prefetch = 0 : i64, scratch_operands = 0 : i64, tpu.core_type = #tpu.core_type<tc>, window_params = [{transform_indices = @transform_0, window_bounds = array<i64: 16, 1>}, {transform_indices = @transform_1, window_bounds = array<i64: 16, 256>}, {transform_indices = @transform_2, window_bounds = array<i64: 16, 256>}]} {
    %c0 = arith.constant 0 : index
    %c0_0 = arith.constant 0 : index
    %0 = vector.load %arg3[%c0, %c0_0] : memref<16x256xf32, #tpu.memory_space<vmem>>, vector<16x256xf32>
    %c0_1 = arith.constant 0 : index
    %c0_2 = arith.constant 0 : index
    %1 = vector.load %arg2[%c0_1, %c0_2] : memref<16x1xi32, #tpu.memory_space<vmem>>, vector<16x1xi32>
    %c256_i32 = arith.constant 256 : i32
    %2 = arith.muli %arg1, %c256_i32 : i32
    %3 = vector.broadcast %2 : i32 to vector<16x1xi32>
    %4 = arith.subi %1, %3 : vector<16x1xi32>
    %5 = tpu.iota {dimensions = array<i32: 1>} : vector<1x256xi32>
    %6 = vector.broadcast %5 : vector<1x256xi32> to vector<16x256xi32>
    %7 = vector.broadcast %4 : vector<16x1xi32> to vector<16x256xi32>
    %8 = arith.cmpi eq, %6, %7 : vector<16x256xi32>
    %cst = arith.constant 0.000000e+00 : f32
    %9 = vector.broadcast %cst : f32 to vector<16x256xf32>
    %10 = arith.select %8, %0, %9 : vector<16x256xi1>, vector<16x256xf32>
    %cst_3 = arith.constant dense<0.000000e+00> : vector<16xf32>
    %11 = vector.multi_reduction <add>, %10, %cst_3 [1] : vector<16x256xf32> to vector<16xf32>
    %12 = vector.shape_cast %11 : vector<16xf32> to vector<16x1xf32>
    %13 = arith.mulf %12, %12 : vector<16x1xf32>
    %cst_4 = arith.constant 1.000000e+00 : f32
    %14 = vector.broadcast %cst_4 : f32 to vector<16x1xf32>
    %15 = arith.subf %14, %13 : vector<16x1xf32>
    %cst_5 = arith.constant 0.000000e+00 : f32
    %16 = vector.broadcast %cst_5 : f32 to vector<16x1xf32>
    %17 = arith.maximumf %15, %16 : vector<16x1xf32>
    %18 = math.sqrt %17 : vector<16x1xf32>
    %cst_6 = arith.constant 0.87758255 : f32
    %19 = vector.broadcast %cst_6 : f32 to vector<16x1xf32>
    %20 = arith.mulf %12, %19 : vector<16x1xf32>
    %cst_7 = arith.constant 0.47942555 : f32
    %21 = vector.broadcast %cst_7 : f32 to vector<16x1xf32>
    %22 = arith.mulf %18, %21 : vector<16x1xf32>
    %23 = arith.subf %20, %22 : vector<16x1xf32>
    %cst_8 = arith.constant -0.87758255 : f32
    %24 = vector.broadcast %cst_8 : f32 to vector<16x1xf32>
    %25 = arith.cmpf ogt, %12, %24 : vector<16x1xf32>
    %cst_9 = arith.constant 0.239712775 : f32
    %26 = vector.broadcast %cst_9 : f32 to vector<16x1xf32>
    %27 = arith.subf %12, %26 : vector<16x1xf32>
    %28 = arith.select %25, %23, %27 : vector<16x1xi1>, vector<16x1xf32>
    %29 = vector.shape_cast %28 : vector<16x1xf32> to vector<16x1xf32>
    %30 = vector.broadcast %29 : vector<16x1xf32> to vector<16x256xf32>
    %31 = arith.select %8, %30, %0 : vector<16x256xi1>, vector<16x256xf32>
    %cst_10 = arith.constant 6.400000e+01 : f32
    %32 = vector.broadcast %cst_10 : f32 to vector<16x256xf32>
    %33 = arith.mulf %31, %32 : vector<16x256xf32>
    %c0_11 = arith.constant 0 : index
    %c0_12 = arith.constant 0 : index
    %34 = vector.load %arg4[%c0_11, %c0_12] : memref<16x256xf32, #tpu.memory_space<vmem>>, vector<16x256xf32>
    tpu.vector_store %arg4[%c0_11, %c0_12], %33 {strides = array<i32>} : memref<16x256xf32, #tpu.memory_space<vmem>>, vector<16x256xf32>,
    return
  }
  func.func @transform_0(%arg0: i32, %arg1: i32) -> (i32, i32) {
    %c0_i32 = arith.constant 0 : i32
    %c0_i32_0 = arith.constant 0 : i32
    return %arg0, %c0_i32 : i32, i32
  }
  func.func @transform_1(%arg0: i32, %arg1: i32) -> (i32, i32) {
    %c0_i32 = arith.constant 0 : i32
    return %arg0, %arg1 : i32, i32
  }
  func.func @transform_2(%arg0: i32, %arg1: i32) -> (i32, i32) {
    %c0_i32 = arith.constant 0 : i32
    return %arg0, %arg1 : i32, i32
  }
}

</mosaic_0001>

<llo_original>
// kernel: tpu_custom_call.1
$region0: #{tpu_custom_call.1}
  #allocation0 [shape = 'u32[]', space=smem, size = 0x4, offset = 0x4, fixed_abs, tag = 'smem constant byte address 0x4 - core index']
  #allocation1 [shape = 'u32[144,128]{1,0:T(1,128)}', space=vmem, size = 0x12000, scoped, tag = 'internal scratch']
  %s0 = inlined_call_operand.vmem [shape: s32[16,1], index: 0, kind: input, shape index: {}]
  %s1 = inlined_call_operand.hbm [shape: f32[16,512], index: 1, kind: input, shape index: {}, may-alias: {1,2}]
  %s2 = inlined_call_operand.hbm [shape: f32[16,512], index: 2, kind: output, shape index: {}, may-alias: {1,2}]
  %s3 = sld [smem:[#allocation0]]
  $region45: #{tpu_custom_call.1} parent=0
    _
  %s5 = ssub.s32 1, %s3
  %s6 = scalar_select 0, %s5, %s3
  $region1: #{tpu_custom_call.1} parent=0
    #allocation2 [shape = 'u8[32768]{0}', space=vmem, size = 0x8000, scoped, tag = 'input window, operand 1']
    #allocation3 [shape = 's32[2]{0}', space=sflag, size = 0x8, scoped, tag = 'scoped memory for tpu_custom_call.1']
    #allocation4 [shape = 's32[2]{0}', space=sflag, size = 0x8, scoped, tag = 'scoped memory for tpu_custom_call.1']
    #allocation5 [shape = 'u8[32768]{0}', space=vmem, size = 0x8000, scoped, tag = 'output window, operand 0']
    %7 = vsyncpa [#allocation3], 0
    %s8 = scalar_lea.sflag [#allocation3], 1
    %9 = vsyncpa %s8, 0
    %10 = vsyncpa [#allocation4], 0
    %s11 = scalar_lea.sflag [#allocation4], 1
    %12 = vsyncpa %s11, 0
    loop: start=0, step=1, limit=4
    $region2: #{tpu_custom_call.1} parent=1 // loop_pre_header
      _
    $region3: #{tpu_custom_call.1} parent=1 // loop_header
      %s14 = sphi 0, %s18
      %p15 = scmp.ge.s32.totalorder %s14, 4
      %s21 = sphi 0, %s33
      %s22 = sphi 0, %s29
      %s23 = sphi 0, %s21
      %s24 = sphi 0, %s22
      %s25 = sphi 0, %s23
      %s26 = sphi 0, %s24
      %s36 = sphi 0, %s38
      %s39 = sphi 0, %s36
      %s40 = sphi 0, %s39
      %s56 = sphi 0, %s40
      %s64 = sphi 0, %s66
      %s67 = sphi 0, %s64
      %s68 = sphi 0, %s67
      %s84 = sphi 0, %s68
      %s92 = sphi 0, %s94
      %s95 = sphi 0, %s92
      %s96 = sphi 0, %s95
      %s112 = sphi 0, %s96
    $region4: #{tpu_custom_call.1} parent=1 // loop_header_branch
      %17 = sbr.rel (%p15) target = $region8
    $region5: #{tpu_custom_call.1} parent=1 // loop_body
      %s19 = ssub.s32 %s14, 1
      %s20 = ssub.s32 %s14, 2
      %s27 = sadd.s32 1, %s22
      %p28 = scmp.ge.s32.totalorder %s27, 2
      %s29 = scalar_select %p28, 0, %s27
      %s30 = sadd.s32 1, %s21
      %s31 = scalar_select %p28, %s30, %s21
      %p32 = scmp.ge.s32.totalorder %s31, 1
      %s33 = scalar_select %p32, 0, %s31
      %s34 = ssub.s32 %s21, %s33
      %p35 = scmp.eq.s32.totalorder %s34, 0
      %s37 = sadd.s32 %s36, 1
      %s38 = scalar_select %p35, %s36, %s37
      %p41 = pneg %p35
      %p42 = scmp.eq.s32.totalorder %s14, 1
      %p43 = por %p41, %p42
      %p44 = scmp.ne.s32.totalorder %s36, %s39
      %p45 = scmp.eq.s32.totalorder %s14, 0
      %p46 = por %p44, %p45
      %p47 = scmp.ne.s32.totalorder %s36, %s39
      %p48 = scmp.eq.s32.totalorder %s19, 1
      %p49 = por %p47, %p48
      %p50 = scmp.ne.s32.totalorder %s39, %s40
      %p51 = scmp.eq.s32.totalorder %s19, 0
      %p52 = por %p50, %p51
      %p53 = scmp.ne.s32.totalorder %s39, %s40
      %p54 = scmp.eq.s32.totalorder %s20, 1
      %p55 = por %p53, %p54
      %p57 = scmp.ne.s32.totalorder %s40, %s56
      %p58 = scmp.eq.s32.totalorder %s20, 0
      %p59 = por %p57, %p58
      %s60 = ssub.s32 %s21, %s33
      %s61 = ssub.s32 %s22, %s29
      %s62 = sor.u32 %s60, %s61
      %p63 = scmp.eq.s32.totalorder %s62, 0
      %s65 = sadd.s32 %s64, 1
      %s66 = scalar_select %p63, %s64, %s65
      %p69 = pneg %p63
      %p70 = scmp.eq.s32.totalorder %s14, 1
      %p71 = por %p69, %p70
      %p72 = scmp.ne.s32.totalorder %s64, %s67
      %p73 = scmp.eq.s32.totalorder %s14, 0
      %p74 = por %p72, %p73
      %p75 = scmp.ne.s32.totalorder %s64, %s67
      %p76 = scmp.eq.s32.totalorder %s19, 1
      %p77 = por %p75, %p76
      %p78 = scmp.ne.s32.totalorder %s67, %s68
      %p79 = scmp.eq.s32.totalorder %s19, 0
      %p80 = por %p78, %p79
      %p81 = scmp.ne.s32.totalorder %s67, %s68
      %p82 = scmp.eq.s32.totalorder %s20, 1
      %p83 = por %p81, %p82
      %p85 = scmp.ne.s32.totalorder %s68, %s84
      %p86 = scmp.eq.s32.totalorder %s20, 0
      %p87 = por %p85, %p86
      %s88 = ssub.s32 %s21, %s33
      %s89 = ssub.s32 %s22, %s29
      %s90 = sor.u32 %s88, %s89
      %p91 = scmp.eq.s32.totalorder %s90, 0
      %s93 = sadd.s32 %s92, 1
      %s94 = scalar_select %p91, %s92, %s93
      %p97 = pneg %p91
      %p98 = scmp.eq.s32.totalorder %s14, 1
      %p99 = por %p97, %p98
      %p100 = scmp.ne.s32.totalorder %s92, %s95
      %p101 = scmp.eq.s32.totalorder %s14, 0
      %p102 = por %p100, %p101
      %p103 = scmp.ne.s32.totalorder %s92, %s95
      %p104 = scmp.eq.s32.totalorder %s19, 1
      %p105 = por %p103, %p104
      %p106 = scmp.ne.s32.totalorder %s95, %s96
      %p107 = scmp.eq.s32.totalorder %s19, 0
      %p108 = por %p106, %p107
      %p109 = scmp.ne.s32.totalorder %s95, %s96
      %p110 = scmp.eq.s32.totalorder %s20, 1
      %p111 = por %p109, %p110
      %p113 = scmp.ne.s32.totalorder %s96, %s112
      %p114 = scmp.eq.s32.totalorder %s20, 0
      %p115 = por %p113, %p114
      %p116 = scmp.le.s32.totalorder 1, %s14
      %p117 = scmp.lt.s32.totalorder %s14, 3
      %p118 = pnand %p116, %p117
      %p119 = pneg %p118
      // Predicated region
      $region9: #{tpu_custom_call.1} parent=5 // pred_check
        _
      $region10: #{tpu_custom_call.1} parent=5 // pred_check_branch
        %121 = sbr.rel (%p118) target = $region12
      $region11: #{tpu_custom_call.1} parent=5 // pred_region
        %s122 = ssub.s32 %s14, 1
        // Predicated region
        $region13: #{tpu_custom_call.1} parent=11 // pred_check
          %p123 = pneg %p52
        $region14: #{tpu_custom_call.1} parent=11 // pred_check_branch
          %125 = sbr.rel (%p123) target = $region16
        $region15: #{tpu_custom_call.1} parent=11 // pred_region
          %s126 = smul.u32 2, %s23
          %p127 = scmp.lt.s32.totalorder %s126, 1
          %s128 = scalar_select %p127, %s126, 1
          %s129 = smul.addr %s128, 8
          %s130 = scalar_lea.vmem %s0, %s129
          %s131 = smul.u32 2, %s23
        $region16: #{tpu_custom_call.1} parent=11 // pred_fallthru
          _
      $region12: #{tpu_custom_call.1} parent=5 // pred_fallthru
        _
      %p132 = scmp.lt.s32.totalorder %s14, 2
      // Predicated region
      $region17: #{tpu_custom_call.1} parent=5 // pred_check
        %p133 = pneg %p132
      $region18: #{tpu_custom_call.1} parent=5 // pred_check_branch
        %135 = sbr.rel (%p133) target = $region20
      $region19: #{tpu_custom_call.1} parent=5 // pred_region
        // Predicated region
        $region21: #{tpu_custom_call.1} parent=19 // pred_check
          %p136 = pneg %p74
        $region22: #{tpu_custom_call.1} parent=19 // pred_check_branch
          %138 = sbr.rel (%p136) target = $region24
        $region23: #{tpu_custom_call.1} parent=19 // pred_region
          %s139 = sand.u32 %s64, 1
          %s140 = scalar_lea.sflag [#allocation3], %s139
          %s141 = sand.u32 %s64, 1
          %s142 = smul.addr %s141, 32
          %s143 = scalar_lea.vmem [#allocation2], %s142
          %s144 = smul.u32 2, %s21
          %s145 = smul.u32 2, %s22
          %s147 = ssub.s32 512, 512
          %148 = vsyncadd %s140, %s147
          %s149 = smul.addr %s144, 4
          %s150 = sadd.s32 %s145, %s149
          %s151 = smul.addr %s150, 128
          %s152 = scalar_lea.hbm %s1, %s151
          %s153 = sshll.u32 %s143, 4
          %s154 = int_to_ptr.vmem [resolvable:$true] %s153
          %159 = dma.hbm_to_vmem [thread:$0]  %s152, 512, %s154, %s140, 512, 256, 16
        $region24: #{tpu_custom_call.1} parent=19 // pred_fallthru
          _
      $region20: #{tpu_custom_call.1} parent=5 // pred_fallthru
        _
      %p160 = scmp.le.s32.totalorder 1, %s14
      %p161 = scmp.lt.s32.totalorder %s14, 3
      %p162 = pnand %p160, %p161
      %p163 = pneg %p162
      // Predicated region
      $region25: #{tpu_custom_call.1} parent=5 // pred_check
        _
      $region26: #{tpu_custom_call.1} parent=5 // pred_check_branch
        %165 = sbr.rel (%p162) target = $region28
      $region27: #{tpu_custom_call.1} parent=5 // pred_region
        %s166 = ssub.s32 %s14, 1
        %s167 = sand.u32 %s67, 1
        %s168 = scalar_lea.sflag [#allocation3], %s167
        %s169 = sand.u32 %s67, 1
        %s170 = smul.addr %s169, 32
        %s171 = scalar_lea.vmem [#allocation2], %s170
        // Predicated region
        $region29: #{tpu_custom_call.1} parent=27 // pred_check
          %p172 = pneg %p80
        $region30: #{tpu_custom_call.1} parent=27 // pred_check_branch
          %174 = sbr.rel (%p172) target = $region32
        $region31: #{tpu_custom_call.1} parent=27 // pred_region
          %175 = dma.done %s168, 512
        $region32: #{tpu_custom_call.1} parent=27 // pred_fallthru
          _
        %s176 = smul.u32 2, %s23
        %p177 = scmp.lt.s32.totalorder %s176, 1
        %s178 = scalar_select %p177, %s176, 1
        %s179 = smul.addr %s178, 8
        %s180 = scalar_lea.vmem %s0, %s179
        %p181 = pneg %p52
        %p182 = pneg %p49
        %s183 = sand.u32 %s67, 1
        %s184 = scalar_lea.sflag [#allocation3], %s183
        %s185 = sand.u32 %s67, 1
        %s186 = smul.addr %s185, 32
        %s187 = scalar_lea.vmem [#allocation2], %s186
        %p188 = pneg %p80
        %p189 = pneg %p77
        %p190 = pneg %p108
        %p191 = pneg %p105
        %s192 = sand.u32 %s95, 1
        %s193 = scalar_lea.sflag [#allocation4], %s192
        %s194 = sand.u32 %s95, 1
        %s195 = smul.addr %s194, 32
        %s196 = scalar_lea.vmem [#allocation5], %s195
        %s197 = smul.u32 2, %s23
        %p198 = scmp.lt.s32.totalorder %s197, 1
        %s199 = scalar_select %p198, %s197, 1
        %s200 = smul.addr %s199, 8
        %s201 = scalar_lea.vmem %s0, %s200
        %s202 = smul.u32 2, %s23
        %s203 = smul.u32 2, %s23
        %s204 = smul.u32 2, %s24
        %s205 = smul.u32 2, %s23
        %s206 = smul.u32 2, %s24
        %v207 = vld [vmem:[%s171] sm:$0xff]
        %v208 = vld [vmem:[%s171 + $0x8] sm:$0xff]
        %v209 = vld [vmem:[%s171 + $0x10] sm:$0xff]
        %v210 = vld [vmem:[%s171 + $0x18] sm:$0xff]
        %v211 = vld [vmem:[%s201] sm:$0xff]
        %v212 = vld [vmem:[%s201 + $0x8] sm:$0xff]
        %s213 = smul.u32 %s24, 256
        %v214 = vstv %s213
        %v215 = vsub.s32 %v211, %v214
        %v216 = vsub.s32 %v212, %v214
        %v217 = vlaneseq
        %v218 = vand.u32 %v217, 127
        %v219 = vadd.s32 %v218, 128
        %220 = vset.pattern.permute.xlu0 0
        %221 = vperm.xlu0 %220, %v215
        %v222 = vpop.permute.xlu0 %221
        %223 = vset.pattern.permute.xlu0 0
        %224 = vperm.xlu0 %223, %v216
        %v225 = vpop.permute.xlu0 %224
        %vm226 = vcmp.eq.s32.totalorder %v218, %v222
        %vm227 = vcmp.eq.s32.totalorder %v219, %v222
        %vm228 = vcmp.eq.s32.totalorder %v218, %v225
        %vm229 = vcmp.eq.s32.totalorder %v219, %v225
        %v230 = vsel %vm226, %v207, 0.0
        %v231 = vsel %vm227, %v208, 0.0
        %v232 = vsel %vm228, %v209, 0.0
        %v233 = vsel %vm229, %v210, 0.0
        %v234 = vadd.f32 %v230, %v231
        %235 = vadd.xlane.f32.xlu0 %v234
        %v236 = vpop.xlane.xlu0 %235
        %v237 = vadd.f32 %v232, %v233
        %238 = vadd.xlane.f32.xlu0 %v237
        %v239 = vpop.xlane.xlu0 %238
        %v240 = vmul.f32 %v236, %v236
        %v241 = vmul.f32 %v239, %v239
        %v242 = vsub.f32 1.0, %v240
        %v243 = vsub.f32 1.0, %v241
        %v244 = vmax.f32 %v242, 0.0
        %v245 = vmax.f32 %v243, 0.0
        %v246 = vrsqrt.pop %v244
        %v247 = vmul.f32 %v244, %v246
        %vm248 = vcmp.eq.f32.partialorder %v244, inf
        %v249 = vsel %vm248, %v244, %v247
        %vm250 = vcmp.eq.f32.partialorder %v244, 0.0
        %v251 = vand.u32 %v244, 2147483648
        %v252 = vsel %vm250, %v251, %v249
        %v253 = vrsqrt.pop %v245
        %v254 = vmul.f32 %v245, %v253
        %vm255 = vcmp.eq.f32.partialorder %v245, inf
        %v256 = vsel %vm255, %v245, %v254
        %vm257 = vcmp.eq.f32.partialorder %v245, 0.0
        %v258 = vand.u32 %v245, 2147483648
        %v259 = vsel %vm257, %v258, %v256
        %v260 = vmul.f32 %v236, 0.87758255
        %v261 = vmul.f32 %v239, 0.87758255
        %v262 = vmul.f32 %v252, 0.47942555
        %v263 = vmul.f32 %v259, 0.47942555
        %v264 = vsub.f32 %v260, %v262
        %v265 = vsub.f32 %v261, %v263
        %vm266 = vcmp.gt.f32.partialorder %v236, -0.87758255
        %vm267 = vcmp.gt.f32.partialorder %v239, -0.87758255
        %v268 = vsub.f32 %v236, 0.23971277
        %v269 = vsub.f32 %v239, 0.23971277
        %v270 = vsel %vm266, %v264, %v268
        %v271 = vsel %vm267, %v265, %v269
        %v272 = vsel %vm226, %v270, %v207
        %v273 = vsel %vm227, %v270, %v208
        %v274 = vsel %vm228, %v271, %v209
        %v275 = vsel %vm229, %v271, %v210
        %v276 = vmul.f32 %v272, 64.0
        %v277 = vmul.f32 %v273, 64.0
        %v278 = vmul.f32 %v274, 64.0
        %v279 = vmul.f32 %v275, 64.0
        %280 = vst [vmem:[%s196] sm:$0xff] %v276
        %281 = vst [vmem:[%s196 + $0x8] sm:$0xff] %v277
        %282 = vst [vmem:[%s196 + $0x10] sm:$0xff] %v278
        %283 = vst [vmem:[%s196 + $0x18] sm:$0xff] %v279
        %s284 = sand.u32 %s95, 1
        %s285 = scalar_lea.sflag [#allocation4], %s284
        %s286 = sand.u32 %s95, 1
        %s287 = smul.addr %s286, 32
        %s288 = scalar_lea.vmem [#allocation5], %s287
        // Predicated region
        $region33: #{tpu_custom_call.1} parent=27 // pred_check
          %p289 = pneg %p105
        $region34: #{tpu_custom_call.1} parent=27 // pred_check_branch
          %291 = sbr.rel (%p289) target = $region36
        $region35: #{tpu_custom_call.1} parent=27 // pred_region
          %s292 = smul.u32 2, %s23
          %s293 = smul.u32 2, %s24
          %s295 = ssub.s32 512, 512
          %296 = vsyncadd %s285, %s295
          %s297 = smul.addr %s292, 4
          %s298 = sadd.s32 %s293, %s297
          %s299 = smul.addr %s298, 128
          %s300 = scalar_lea.hbm %s2, %s299
          %s301 = sshll.u32 %s288, 4
          %s302 = int_to_ptr.vmem [resolvable:$true] %s301
          %307 = dma.vmem_to_hbm [thread:$0]  %s302, 512, %s300, %s285, 256, 512, 16
        $region36: #{tpu_custom_call.1} parent=27 // pred_fallthru
          _
      $region28: #{tpu_custom_call.1} parent=5 // pred_fallthru
        _
      %p308 = scmp.le.s32.totalorder 2, %s14
      // Predicated region
      $region37: #{tpu_custom_call.1} parent=5 // pred_check
        %p309 = pneg %p308
      $region38: #{tpu_custom_call.1} parent=5 // pred_check_branch
        %311 = sbr.rel (%p309) target = $region40
      $region39: #{tpu_custom_call.1} parent=5 // pred_region
        %s312 = ssub.s32 %s14, 2
        // Predicated region
        $region41: #{tpu_custom_call.1} parent=39 // pred_check
          %p313 = pneg %p111
        $region42: #{tpu_custom_call.1} parent=39 // pred_check_branch
          %315 = sbr.rel (%p313) target = $region44
        $region43: #{tpu_custom_call.1} parent=39 // pred_region
          %s316 = sand.u32 %s96, 1
          %s317 = scalar_lea.sflag [#allocation4], %s316
          %s318 = sand.u32 %s96, 1
          %s319 = smul.addr %s318, 32
          %s320 = scalar_lea.vmem [#allocation5], %s319
          %321 = dma.done %s317, 512
        $region44: #{tpu_custom_call.1} parent=39 // pred_fallthru
          _
      $region40: #{tpu_custom_call.1} parent=5 // pred_fallthru
        _
    $region6: #{tpu_custom_call.1} parent=1 // loop_footer
      %s18 = sadd.s32 1, %s14
    $region7: #{tpu_custom_call.1} parent=1 // loop_footer_branch
      %13 = sbr.rel target = $region3
    $region8: #{tpu_custom_call.1} parent=1 // loop_exit
      _
    %322 = vsyncpa [#allocation3], 1
    %s323 = scalar_lea.sflag [#allocation3], 1
    %324 = vsyncpa %s323, 1
    %325 = vsyncpa [#allocation4], 1
    %s326 = scalar_lea.sflag [#allocation4], 1
    %327 = vsyncpa %s326, 1

</llo_original>
